<compile_context>
chip_gen: v7x
topology: tpu7x:2x2x1
jax: 0.10.0
libtpu: 0.0.40
codegen_flags: <defaults>
</compile_context>

<pallas_src>
import math

import jax
import jax.numpy as jnp
from jax import lax
from jax.experimental import pallas as pl
from jax.experimental.pallas import tpu as pltpu


def mlp_kernel(x_ref, w1_ref, b1_ref, w2_ref, b2_ref, o_ref, acc_ref):
    # x_ref:  (TM, E)  bf16        w1_ref: (E, TH) bf16   b1_ref: (1, TH) f32
    # w2_ref: (TH, E)  bf16        b2_ref: (1, E)  f32
    # o_ref:  (TM, E)  out dtype   acc_ref: (TM, E) f32 scratch (persists over h)
    h_idx = pl.program_id(1)

    @pl.when(h_idx == 0)
    def _():
        acc_ref[...] = jnp.zeros_like(acc_ref)

    x = x_ref[...]

    # Linear 1 partial slab: bf16 MXU matmul, f32 accumulation, + bias chunk.
    h = jnp.dot(x, w1_ref[...], preferred_element_type=jnp.float32)
    h = h + b1_ref[...]

    # Exact (erf-based) GELU in f32 — matches nn.GELU() default semantics.
    h = 0.5 * h * (1.0 + lax.erf(h * (1.0 / math.sqrt(2.0))))

    # Dropout(p) in eval mode == identity.

    # Linear 2 partial-sum over the H chunk into the f32 accumulator.
    acc_ref[...] += jnp.dot(h.astype(w2_ref.dtype), w2_ref[...],
                            preferred_element_type=jnp.float32)

    # Dropout(p) in eval mode == identity.

    @pl.when(h_idx == pl.num_programs(1) - 1)
    def _():
        o_ref[...] = (acc_ref[...] + b2_ref[...]).astype(o_ref.dtype)


def _round_up(a, b):
    return ((a + b - 1) // b) * b


def mlp_forward(x, w1, b1, w2, b2, *, tile_m=256, tile_h=512,
                compute_dtype=jnp.bfloat16):
    """x: (B, S, E). w1: (E, H), b1: (H,), w2: (H, E), b2: (E,). Returns (B, S, E)."""
    B, S, E = x.shape
    H = w1.shape[1]
    M = B * S

    # --- tile selection honoring the (8, 128) layout constraints ------------
    # Row tile: largest requested slab not bigger than the (8-aligned) row
    # count; rows are zero-padded so no tail masking is needed.
    tile_m = max(8, min(tile_m, _round_up(M, 8)))
    M_pad = _round_up(M, tile_m)

    # Reduction (H) tile: must be a multiple of 128 that divides H, else use H.
    if H % 128 != 0 or H <= tile_h or H % tile_h != 0:
        tile_h = H
    num_h = H // tile_h

    x2d = x.reshape(M, E)
    if M_pad != M:
        x2d = jnp.pad(x2d, ((0, M_pad - M), (0, 0)))

    # bf16 operands for the MXU; biases and accumulation stay f32.
    x2d = x2d.astype(compute_dtype)
    w1c = w1.astype(compute_dtype)
    w2c = w2.astype(compute_dtype)
    b1_2d = b1.reshape(1, H).astype(jnp.float32)
    b2_2d = b2.reshape(1, E).astype(jnp.float32)

    out_dtype = x.dtype
    out_itemsize = jnp.dtype(out_dtype).itemsize

    cost = pl.CostEstimate(
        flops=4 * M_pad * E * H,            # two matmuls
        transcendentals=M_pad * H,          # erf in the GELU
        bytes_accessed=(x2d.size * x2d.dtype.itemsize
                        + w1c.size * w1c.dtype.itemsize
                        + w2c.size * w2c.dtype.itemsize
                        + b1_2d.size * 4 + b2_2d.size * 4
                        + M_pad * E * out_itemsize),
    )

    # Double-buffered tiles + f32 accumulator scratch + (TM, TH) intermediate.
    vmem_need = (
        2 * tile_m * E * (x2d.dtype.itemsize + out_itemsize)
        + 2 * (E * tile_h + tile_h * E) * 2
        + 2 * (tile_h + E) * 4
        + tile_m * E * 4
        + tile_m * tile_h * 4
    )
    vmem_limit = min(max(int(vmem_need * 3 // 2) + (1 << 20), 32 << 20), 64 << 20)

    out2d = pl.pallas_call(
        mlp_kernel,
        out_shape=jax.ShapeDtypeStruct((M_pad, E), out_dtype),
        grid_spec=pltpu.PrefetchScalarGridSpec(
            num_scalar_prefetch=0,
            grid=(M_pad // tile_m, num_h),
            in_specs=[
                pl.BlockSpec((tile_m, E), lambda i, h: (i, 0)),   # x row slab
                pl.BlockSpec((E, tile_h), lambda i, h: (0, h)),   # w1 column slab
                pl.BlockSpec((1, tile_h), lambda i, h: (0, h)),   # b1 chunk
                pl.BlockSpec((tile_h, E), lambda i, h: (h, 0)),   # w2 row slab
                pl.BlockSpec((1, E), lambda i, h: (0, 0)),        # b2
            ],
            out_specs=pl.BlockSpec((tile_m, E), lambda i, h: (i, 0)),
            scratch_shapes=[pltpu.VMEM((tile_m, E), jnp.float32)],
        ),
        compiler_params=pltpu.CompilerParams(
            dimension_semantics=("parallel", "arbitrary"),
            vmem_limit_bytes=vmem_limit,
        ),
        cost_estimate=cost,
    )(x2d, w1c, b1_2d, w2c, b2_2d)

    return out2d[:M].reshape(B, S, E)


def mlp_reference(x, w1, b1, w2, b2):
    h = jnp.einsum("bse,eh->bsh", x, w1) + b1
    h = 0.5 * h * (1.0 + lax.erf(h / jnp.sqrt(2.0)))
    y = jnp.einsum("bsh,he->bse", h, w2) + b2
    return y


if __name__ == "__main__":
    # Small but lane-dense shapes: batch=2, seq=8, embed_dim=128, mlp_dim=256.
    B, S, E, H = 2, 8, 128, 256

    key = jax.random.PRNGKey(0)
    kx, k1, k2, k3, k4 = jax.random.split(key, 5)

    x = jax.random.normal(kx, (B, S, E), dtype=jnp.float32)

    # Deterministic synthetic parameters (nn.Linear(E,H)/(H,E) init ranges).
    # Stored as (in, out) so the kernel does x @ w (PyTorch stores (out, in)).
    bound1 = 1.0 / math.sqrt(E)
    bound2 = 1.0 / math.sqrt(H)
    w1 = jax.random.uniform(k1, (E, H), jnp.float32, -bound1, bound1)
    b1 = jax.random.uniform(k2, (H,), jnp.float32, -bound1, bound1)
    w2 = jax.random.uniform(k3, (H, E), jnp.float32, -bound2, bound2)
    b2 = jax.random.uniform(k4, (E,), jnp.float32, -bound2, bound2)

    out = mlp_forward(x, w1, b1, w2, b2)
    out = jax.block_until_ready(out)

    ref = mlp_reference(x, w1, b1, w2, b2)
    assert out.shape == (B, S, E)
    # Tolerance accounts for bf16 operands on the MXU (f32 accumulation).
    assert jnp.allclose(out, ref, atol=3e-2, rtol=3e-2), (
        "mismatch vs reference, max abs err = "
        f"{float(jnp.max(jnp.abs(out - ref)))}")

    print("KERNEL_OK")
</pallas_src>

<mosaic_0001>
module attributes {stable_mosaic.version = 11 : i64} {
  func.func @mlp_kernel(%arg0: i32, %arg1: i32, %arg2: memref<16x128xbf16, #tpu.memory_space<vmem>>, %arg3: memref<128x256xbf16, #tpu.memory_space<vmem>>, %arg4: memref<1x256xf32, #tpu.memory_space<vmem>>, %arg5: memref<256x128xbf16, #tpu.memory_space<vmem>>, %arg6: memref<1x128xf32, #tpu.memory_space<vmem>>, %arg7: memref<16x128xf32, #tpu.memory_space<vmem>>, %arg8: memref<16x128xf32, #tpu.memory_space<vmem>>) attributes {dimension_semantics = [#tpu.dimension_semantics<parallel>, #tpu.dimension_semantics<arbitrary>], iteration_bounds = array<i64: 1, 1>, scalar_prefetch = 0 : i64, scratch_operands = 1 : i64, tpu.core_type = #tpu.core_type<tc>, window_params = [{transform_indices = @transform_0, window_bounds = array<i64: 16, 128>}, {transform_indices = @transform_1, window_bounds = array<i64: 128, 256>}, {transform_indices = @transform_2, window_bounds = array<i64: 1, 256>}, {transform_indices = @transform_3, window_bounds = array<i64: 256, 128>}, {pipeline_mode = #tpu.pipeline_mode<synchronous>, transform_indices = @transform_4, window_bounds = array<i64: 1, 128>}, {transform_indices = @transform_5, window_bounds = array<i64: 16, 128>}]} {
    %c0_i32 = arith.constant 0 : i32
    %0 = arith.cmpi eq, %arg1, %c0_i32 : i32
    %1 = arith.extui %0 : i1 to i32
    %c0_i32_0 = arith.constant 0 : i32
    %2 = arith.cmpi ne, %1, %c0_i32_0 : i32
    scf.if %2 {
      %cst_18 = arith.constant 0.000000e+00 : f32
      %26 = vector.broadcast %cst_18 : f32 to vector<16x128xf32>
      %c0_19 = arith.constant 0 : index
      %c0_20 = arith.constant 0 : index
      %27 = vector.load %arg8[%c0_19, %c0_20] : memref<16x128xf32, #tpu.memory_space<vmem>>, vector<16x128xf32>
      tpu.vector_store %arg8[%c0_19, %c0_20], %26 {strides = array<i32>} : memref<16x128xf32, #tpu.memory_space<vmem>>, vector<16x128xf32>,
    } else {
    }
    %c0 = arith.constant 0 : index
    %c0_1 = arith.constant 0 : index
    %3 = vector.load %arg2[%c0, %c0_1] : memref<16x128xbf16, #tpu.memory_space<vmem>>, vector<16x128xbf16>
    %c0_2 = arith.constant 0 : index
    %c0_3 = arith.constant 0 : index
    %4 = vector.load %arg3[%c0_2, %c0_3] : memref<128x256xbf16, #tpu.memory_space<vmem>>, vector<128x256xbf16>
    %cst = arith.constant dense<0.000000e+00> : vector<16x256xf32>
    %5 = tpu.matmul %3, %4, %cst {dimension_numbers = #tpu.dot_dimension_numbers<[1], [0], [0], [1], [0, 0, 1, 1], [], []>} : vector<16x128xbf16>, vector<128x256xbf16>, vector<16x256xf32> -> vector<16x256xf32>
    %c0_4 = arith.constant 0 : index
    %c0_5 = arith.constant 0 : index
    %6 = vector.load %arg4[%c0_4, %c0_5] : memref<1x256xf32, #tpu.memory_space<vmem>>, vector<1x256xf32>
    %7 = vector.broadcast %6 : vector<1x256xf32> to vector<16x256xf32>
    %8 = arith.addf %5, %7 : vector<16x256xf32>
    %cst_6 = arith.constant 5.000000e-01 : f32
    %9 = vector.broadcast %cst_6 : f32 to vector<16x256xf32>
    %10 = arith.mulf %9, %8 : vector<16x256xf32>
    %cst_7 = arith.constant 0.707106769 : f32
    %11 = vector.broadcast %cst_7 : f32 to vector<16x256xf32>
    %12 = arith.mulf %8, %11 : vector<16x256xf32>
    %13 = math.erf %12 : vector<16x256xf32>
    %cst_8 = arith.constant 1.000000e+00 : f32
    %14 = vector.broadcast %cst_8 : f32 to vector<16x256xf32>
    %15 = arith.addf %14, %13 : vector<16x256xf32>
    %16 = arith.mulf %10, %15 : vector<16x256xf32>
    %c0_9 = arith.constant 0 : index
    %c0_10 = arith.constant 0 : index
    %17 = vector.load %arg8[%c0_9, %c0_10] : memref<16x128xf32, #tpu.memory_space<vmem>>, vector<16x128xf32>
    %18 = arith.truncf %16 : vector<16x256xf32> to vector<16x256xbf16>
    %c0_11 = arith.constant 0 : index
    %c0_12 = arith.constant 0 : index
    %19 = vector.load %arg5[%c0_11, %c0_12] : memref<256x128xbf16, #tpu.memory_space<vmem>>, vector<256x128xbf16>
    %cst_13 = arith.constant dense<0.000000e+00> : vector<16x128xf32>
    %20 = tpu.matmul %18, %19, %cst_13 {dimension_numbers = #tpu.dot_dimension_numbers<[1], [0], [0], [1], [0, 0, 1, 1], [], []>} : vector<16x256xbf16>, vector<256x128xbf16>, vector<16x128xf32> -> vector<16x128xf32>
    %21 = arith.addf %17, %20 : vector<16x128xf32>
    %c0_14 = arith.constant 0 : index
    %c0_15 = arith.constant 0 : index
    %22 = vector.load %arg8[%c0_14, %c0_15] : memref<16x128xf32, #tpu.memory_space<vmem>>, vector<16x128xf32>
    tpu.vector_store %arg8[%c0_14, %c0_15], %21 {strides = array<i32>} : memref<16x128xf32, #tpu.memory_space<vmem>>, vector<16x128xf32>,
    %c0_i32_16 = arith.constant 0 : i32
    %23 = arith.cmpi eq, %arg1, %c0_i32_16 : i32
    %24 = arith.extui %23 : i1 to i32
    %c0_i32_17 = arith.constant 0 : i32
    %25 = arith.cmpi ne, %24, %c0_i32_17 : i32
    scf.if %25 {
      %c0_18 = arith.constant 0 : index
      %c0_19 = arith.constant 0 : index
      %26 = vector.load %arg8[%c0_18, %c0_19] : memref<16x128xf32, #tpu.memory_space<vmem>>, vector<16x128xf32>
      %c0_20 = arith.constant 0 : index
      %c0_21 = arith.constant 0 : index
      %27 = vector.load %arg6[%c0_20, %c0_21] : memref<1x128xf32, #tpu.memory_space<vmem>>, vector<1x128xf32>
      %28 = vector.broadcast %27 : vector<1x128xf32> to vector<16x128xf32>
      %29 = arith.addf %26, %28 : vector<16x128xf32>
      %c0_22 = arith.constant 0 : index
      %c0_23 = arith.constant 0 : index
      %30 = vector.load %arg7[%c0_22, %c0_23] : memref<16x128xf32, #tpu.memory_space<vmem>>, vector<16x128xf32>
      tpu.vector_store %arg7[%c0_22, %c0_23], %29 {strides = array<i32>} : memref<16x128xf32, #tpu.memory_space<vmem>>, vector<16x128xf32>,
    } else {
    }
    return
  }
  func.func @transform_0(%arg0: i32, %arg1: i32) -> (i32, i32) {
    %c0_i32 = arith.constant 0 : i32
    %c0_i32_0 = arith.constant 0 : i32
    return %arg0, %c0_i32 : i32, i32
  }
  func.func @transform_1(%arg0: i32, %arg1: i32) -> (i32, i32) {
    %c0_i32 = arith.constant 0 : i32
    %c0_i32_0 = arith.constant 0 : i32
    return %c0_i32, %arg1 : i32, i32
  }
  func.func @transform_2(%arg0: i32, %arg1: i32) -> (i32, i32) {
    %c0_i32 = arith.constant 0 : i32
    %c0_i32_0 = arith.constant 0 : i32
    return %c0_i32, %arg1 : i32, i32
  }
  func.func @transform_3(%arg0: i32, %arg1: i32) -> (i32, i32) {
    %c0_i32 = arith.constant 0 : i32
    %c0_i32_0 = arith.constant 0 : i32
    return %arg1, %c0_i32 : i32, i32
  }
  func.func @transform_4(%arg0: i32, %arg1: i32) -> (i32, i32) {
    %c0_i32 = arith.constant 0 : i32
    %c0_i32_0 = arith.constant 0 : i32
    %c0_i32_1 = arith.constant 0 : i32
    return %c0_i32, %c0_i32_0 : i32, i32
  }
  func.func @transform_5(%arg0: i32, %arg1: i32) -> (i32, i32) {
    %c0_i32 = arith.constant 0 : i32
    %c0_i32_0 = arith.constant 0 : i32
    return %arg0, %c0_i32 : i32, i32
  }
}

</mosaic_0001>

<llo_original>
// kernel: tpu_custom_call.1
$region0: #{tpu_custom_call.1}
  #allocation0 [shape = 'u32[]', space=smem, size = 0x4, offset = 0x4, fixed_abs, tag = 'smem constant byte address 0x4 - core index']
  #allocation1 [shape = 'u32[144,128]{1,0:T(1,128)}', space=vmem, size = 0x12000, scoped, tag = 'internal scratch']
  #allocation2 [shape = 'f32[16,128]{1,0:T(8,128)}', space=vmem, size = 0x2000, scoped, tag = 'scratch operand']
  %s0 = inlined_call_operand.hbm [shape: bf16[16,128], index: 0, kind: input, shape index: {}]
  %s1 = inlined_call_operand.hbm [shape: bf16[128,256], index: 1, kind: input, shape index: {}]
  %s2 = inlined_call_operand.vmem [shape: f32[1,256], index: 2, kind: input, shape index: {}]
  %s3 = inlined_call_operand.hbm [shape: bf16[256,128], index: 3, kind: input, shape index: {}]
  %s4 = inlined_call_operand.vmem [shape: f32[1,128], index: 4, kind: input, shape index: {}]
  %s5 = inlined_call_operand.hbm [shape: f32[16,128], index: 5, kind: output, shape index: {}]
  %s6 = sld [smem:[#allocation0]]
  $region50: #{tpu_custom_call.1} parent=0
    _
  %s8 = ssub.s32 1, %s6
  %s9 = scalar_select 0, %s8, %s6
  $region1: #{tpu_custom_call.1} parent=0
    #allocation3 [shape = 'u8[4096]{0}', space=vmem, size = 0x1000, scoped, tag = 'input window, operand 0, single buffered']
    #allocation4 [shape = 's32[1]{0}', space=sflag, size = 0x4, scoped, tag = 'scoped memory for tpu_custom_call.1']
    #allocation5 [shape = 's32[1]{0}', space=sflag, size = 0x4, scoped, tag = 'scoped memory for tpu_custom_call.1']
    #allocation6 [shape = 'u8[65536]{0}', space=vmem, size = 0x10000, scoped, tag = 'input window, operand 1, single buffered']
    #allocation7 [shape = 's32[1]{0}', space=sflag, size = 0x4, scoped, tag = 'scoped memory for tpu_custom_call.1']
    #allocation8 [shape = 'u8[65536]{0}', space=vmem, size = 0x10000, scoped, tag = 'input window, operand 3, single buffered']
    #allocation9 [shape = 'u8[8192]{0}', space=vmem, size = 0x2000, scoped, tag = 'output window, operand 0, single buffered']
    %10 = vsyncpa [#allocation4], 0
    %11 = vsyncpa [#allocation7], 0
    %12 = vsyncpa [#allocation5], 0
    // Predicated region
    $region2: #{tpu_custom_call.1} parent=1 // pred_check
      _
    $region3: #{tpu_custom_call.1} parent=1 // pred_check_branch
      %14 = sbr.rel (0) target = $region5
    $region4: #{tpu_custom_call.1} parent=1 // pred_region
      %s16 = ssub.s32 128, 128
      %17 = vsyncadd [#allocation4], %s16
      %s18 = sshll.u32 [#allocation3], 4
      %s19 = int_to_ptr.vmem [resolvable:$true] %s18
      %24 = dma.hbm_to_vmem [thread:$0]  %s0, 128, %s19, [#allocation4], 64, 64, 4
    $region5: #{tpu_custom_call.1} parent=1 // pred_fallthru
      _
    // Predicated region
    $region6: #{tpu_custom_call.1} parent=1 // pred_check
      _
    $region7: #{tpu_custom_call.1} parent=1 // pred_check_branch
      %26 = sbr.rel (0) target = $region9
    $region8: #{tpu_custom_call.1} parent=1 // pred_region
      %s28 = ssub.s32 2048, 2048
      %29 = vsyncadd [#allocation7], %s28
      %s30 = sshll.u32 [#allocation6], 4
      %s31 = int_to_ptr.vmem [resolvable:$true] %s30
      %36 = dma.hbm_to_vmem [thread:$0]  %s1, 2048, %s31, [#allocation7], 128, 128, 8
    $region9: #{tpu_custom_call.1} parent=1 // pred_fallthru
      _
    // Predicated region
    $region10: #{tpu_custom_call.1} parent=1 // pred_check
      _
    $region11: #{tpu_custom_call.1} parent=1 // pred_check_branch
      %38 = sbr.rel (0) target = $region13
    $region12: #{tpu_custom_call.1} parent=1 // pred_region
      _
    $region13: #{tpu_custom_call.1} parent=1 // pred_fallthru
      _
    // Predicated region
    $region14: #{tpu_custom_call.1} parent=1 // pred_check
      _
    $region15: #{tpu_custom_call.1} parent=1 // pred_check_branch
      %40 = sbr.rel (0) target = $region17
    $region16: #{tpu_custom_call.1} parent=1 // pred_region
      %s42 = ssub.s32 2048, 2048
      %43 = vsyncadd [#allocation7], %s42
      %s44 = sshll.u32 [#allocation8], 4
      %s45 = int_to_ptr.vmem [resolvable:$true] %s44
      %50 = dma.hbm_to_vmem [thread:$0]  %s3, 2048, %s45, [#allocation7], 64, 64, 4
    $region17: #{tpu_custom_call.1} parent=1 // pred_fallthru
      _
    // Predicated region
    $region18: #{tpu_custom_call.1} parent=1 // pred_check
      _
    $region19: #{tpu_custom_call.1} parent=1 // pred_check_branch
      %52 = sbr.rel (0) target = $region21
    $region20: #{tpu_custom_call.1} parent=1 // pred_region
      _
    $region21: #{tpu_custom_call.1} parent=1 // pred_fallthru
      _
    // Predicated region
    $region22: #{tpu_custom_call.1} parent=1 // pred_check
      _
    $region23: #{tpu_custom_call.1} parent=1 // pred_check_branch
      %54 = sbr.rel (0) target = $region25
    $region24: #{tpu_custom_call.1} parent=1 // pred_region
      %55 = dma.done [#allocation4], 128
    $region25: #{tpu_custom_call.1} parent=1 // pred_fallthru
      _
    // Predicated region
    $region26: #{tpu_custom_call.1} parent=1 // pred_check
      _
    $region27: #{tpu_custom_call.1} parent=1 // pred_check_branch
      %57 = sbr.rel (0) target = $region29
    $region28: #{tpu_custom_call.1} parent=1 // pred_region
      %58 = dma.done [#allocation7], 2048
    $region29: #{tpu_custom_call.1} parent=1 // pred_fallthru
      _
    // Predicated region
    $region30: #{tpu_custom_call.1} parent=1 // pred_check
      _
    $region31: #{tpu_custom_call.1} parent=1 // pred_check_branch
      %60 = sbr.rel (0) target = $region33
    $region32: #{tpu_custom_call.1} parent=1 // pred_region
      %61 = dma.done [#allocation7], 2048
    $region33: #{tpu_custom_call.1} parent=1 // pred_fallthru
      _
    %p63 = scmp.eq.s32.totalorder 0, 0
    // Predicated region
    $region34: #{tpu_custom_call.1} parent=1 // pred_check
      %p64 = pneg %p63
    $region35: #{tpu_custom_call.1} parent=1 // pred_check_branch
      %66 = sbr.rel (%p64) target = $region37
    $region36: #{tpu_custom_call.1} parent=1 // pred_region
      %67 = vst [vmem:[#allocation2] sm:$0xff] 0.0
      %68 = vst [vmem:[#allocation2 + $0x8] sm:$0xff] 0.0
    $region37: #{tpu_custom_call.1} parent=1 // pred_fallthru
      _
    %v69 = vld [vmem:[#allocation3] sm:$0xf]
    %v70 = vld [vmem:[#allocation3 + $0x4] sm:$0xf]
    %v71 = vld [vmem:[#allocation6] sm:$0xff]
    %v72 = vld [vmem:[#allocation6 + $0x8] sm:$0xff]
    %v73 = vld [vmem:[#allocation6 + $0x10] sm:$0xff]
    %v74 = vld [vmem:[#allocation6 + $0x18] sm:$0xff]
    %v75 = vld [vmem:[#allocation6 + $0x20] sm:$0xff]
    %v76 = vld [vmem:[#allocation6 + $0x28] sm:$0xff]
    %v77 = vld [vmem:[#allocation6 + $0x30] sm:$0xff]
    %v78 = vld [vmem:[#allocation6 + $0x38] sm:$0xff]
    %v79 = vld [vmem:[#allocation6 + $0x40] sm:$0xff]
    %v80 = vld [vmem:[#allocation6 + $0x48] sm:$0xff]
    %v81 = vld [vmem:[#allocation6 + $0x50] sm:$0xff]
    %v82 = vld [vmem:[#allocation6 + $0x58] sm:$0xff]
    %v83 = vld [vmem:[#allocation6 + $0x60] sm:$0xff]
    %v84 = vld [vmem:[#allocation6 + $0x68] sm:$0xff]
    %v85 = vld [vmem:[#allocation6 + $0x70] sm:$0xff]
    %v86 = vld [vmem:[#allocation6 + $0x78] sm:$0xff]
    %v87 = vld [vmem:[%s2] sm:$0x3]
    %v89 = vlaneseq
    %v90 = vshrl.u32 %v89, 7
    %v91 = vsub.s32 0, %v90
    %v92 = vrot.slane %v87, %v91
    %v93 = vlaneseq
    %v94 = vshrl.u32 %v93, 7
    %v95 = vsub.s32 1, %v94
    %v96 = vrot.slane %v87, %v95
    %v101 = vunpack.c.l.b16 %v69
    %v102 = vunpack.c.l.b16 %v70
    %v103 = vpack.c.b16 %v102, %v101
    %v121 = vunpack.c.l.b16 %v71
    %v122 = vunpack.c.h.b16 %v71
    %v123 = vunpack.c.l.b16 %v72
    %v124 = vunpack.c.h.b16 %v72
    %v125 = vunpack.c.l.b16 %v73
    %v126 = vunpack.c.h.b16 %v73
    %v127 = vunpack.c.l.b16 %v74
    %v128 = vunpack.c.h.b16 %v74
    %v129 = vunpack.c.l.b16 %v75
    %v130 = vunpack.c.h.b16 %v75
    %v131 = vunpack.c.l.b16 %v76
    %v132 = vunpack.c.h.b16 %v76
    %v133 = vunpack.c.l.b16 %v77
    %v134 = vunpack.c.h.b16 %v77
    %v135 = vunpack.c.l.b16 %v78
    %v136 = vunpack.c.h.b16 %v78
    %v137 = vunpack.c.l.b16 %v79
    %v138 = vunpack.c.h.b16 %v79
    %v139 = vunpack.c.l.b16 %v80
    %v140 = vunpack.c.h.b16 %v80
    %v141 = vunpack.c.l.b16 %v81
    %v142 = vunpack.c.h.b16 %v81
    %v143 = vunpack.c.l.b16 %v82
    %v144 = vunpack.c.h.b16 %v82
    %v145 = vunpack.c.l.b16 %v83
    %v146 = vunpack.c.h.b16 %v83
    %v147 = vunpack.c.l.b16 %v84
    %v148 = vunpack.c.h.b16 %v84
    %v149 = vunpack.c.l.b16 %v85
    %v150 = vunpack.c.h.b16 %v85
    %v151 = vunpack.c.l.b16 %v86
    %v152 = vunpack.c.h.b16 %v86
    %v153 = vpack.c.b16 %v123, %v121
    %v154 = vpack.c.b16 %v124, %v122
    %v155 = vpack.c.b16 %v127, %v125
    %v156 = vpack.c.b16 %v128, %v126
    %v157 = vpack.c.b16 %v131, %v129
    %v158 = vpack.c.b16 %v132, %v130
    %v159 = vpack.c.b16 %v135, %v133
    %v160 = vpack.c.b16 %v136, %v134
    %v161 = vpack.c.b16 %v139, %v137
    %v162 = vpack.c.b16 %v140, %v138
    %v163 = vpack.c.b16 %v143, %v141
    %v164 = vpack.c.b16 %v144, %v142
    %v165 = vpack.c.b16 %v147, %v145
    %v166 = vpack.c.b16 %v148, %v146
    %v167 = vpack.c.b16 %v151, %v149
    %v168 = vpack.c.b16 %v152, %v150
    %185 = vmatprep.subr.bf16.mxu0 %v154
    %186 = vmatpush1.bf16.msra.mxu0 %v153
    %187 = vmatprep.subr.bf16.mxu0 %v156
    %188 = vmatpush1.bf16.msra.mxu0 %v155
    %189 = vmatprep.subr.bf16.mxu0 %v158
    %190 = vmatpush1.bf16.msra.mxu0 %v157
    %191 = vmatprep.subr.bf16.mxu0 %v160
    %192 = vmatpush1.bf16.msra.mxu0 %v159
    %193 = vmatprep.subr.bf16.mxu0 %v162
    %194 = vmatpush1.bf16.msra.mxu0 %v161
    %195 = vmatprep.subr.bf16.mxu0 %v164
    %196 = vmatpush1.bf16.msra.mxu0 %v163
    %197 = vmatprep.subr.bf16.mxu0 %v166
    %198 = vmatpush1.bf16.msra.mxu0 %v165
    %199 = vmatprep.subr.bf16.mxu0 %v168
    %200 = vmatpush1.bf16.msra.mxu0 %v167
    %201 = vmatprep.subr.bf16.mxu0 0
    %202 = vmatpush1.bf16.msra.mxu0 0
    %203 = vmatprep.subr.bf16.mxu0 0
    %204 = vmatpush1.bf16.msra.mxu0 0
    %205 = vmatprep.subr.bf16.mxu0 0
    %206 = vmatpush1.bf16.msra.mxu0 0
    %207 = vmatprep.subr.bf16.mxu0 0
    %208 = vmatpush1.bf16.msra.mxu0 0
    %209 = vmatprep.subr.bf16.mxu0 0
    %210 = vmatpush1.bf16.msra.mxu0 0
    %211 = vmatprep.subr.bf16.mxu0 0
    %212 = vmatpush1.bf16.msra.mxu0 0
    %213 = vmatprep.subr.bf16.mxu0 0
    %214 = vmatpush1.bf16.msra.mxu0 0
    %215 = vmatprep.subr.bf16.mxu0 0
    %216 = vmatpush1.bf16.msra.mxu0 0
    %217 = vmatprep.mubr.bf16.mxu0 0
    %218 = vmatmul.mubr.bf16.gmra.mrb[0].mxu0 %v103
    %v219 = vpop.f32.mrb[0].mxu0
    %v220 = vadd.f32 %v92, %v219
    %v221 = vpop.f32.mrb[0].mxu0
    %v222 = vadd.f32 %v96, %v221
    %v223 = vpop.f32.mrb[0].mxu0
    %v224 = vadd.f32 %v92, %v223
    %v225 = vpop.f32.mrb[0].mxu0
    %v226 = vadd.f32 %v96, %v225
    %227 = vdwg.mxu0
    %v228 = vmul.f32 %v220, 0.5
    %v229 = vmul.f32 %v222, 0.5
    %v230 = vmul.f32 %v224, 0.5
    %v231 = vmul.f32 %v226, 0.5
    %v232 = vmul.f32 %v220, 0.70710677
    %v233 = vmul.f32 %v222, 0.70710677
    %v234 = vmul.f32 %v224, 0.70710677
    %v235 = vmul.f32 %v226, 0.70710677
    %v236 = verf.f32.pop %v232
    %v237 = verf.f32.pop %v233
    %v238 = verf.f32.pop %v234
    %v239 = verf.f32.pop %v235
    %v240 = vadd.f32 %v236, 1.0
    %v241 = vadd.f32 %v237, 1.0
    %v242 = vadd.f32 %v238, 1.0
    %v243 = vadd.f32 %v239, 1.0
    %v244 = vmul.f32 %v228, %v240
    %v245 = vmul.f32 %v229, %v241
    %v246 = vmul.f32 %v230, %v242
    %v247 = vmul.f32 %v231, %v243
    %v248 = vld [vmem:[#allocation2] sm:$0xff]
    %v249 = vld [vmem:[#allocation2 + $0x8] sm:$0xff]
    %v250 = vpack.c.bf16 %v246, %v244
    %v251 = vpack.c.bf16 %v247, %v245
    %v252 = vld [vmem:[#allocation8] sm:$0xf]
    %v253 = vld [vmem:[#allocation8 + $0x4] sm:$0xf]
    %v254 = vld [vmem:[#allocation8 + $0x8] sm:$0xf]
    %v255 = vld [vmem:[#allocation8 + $0xc] sm:$0xf]
    %v256 = vld [vmem:[#allocation8 + $0x10] sm:$0xf]
    %v257 = vld [vmem:[#allocation8 + $0x14] sm:$0xf]
    %v258 = vld [vmem:[#allocation8 + $0x18] sm:$0xf]
    %v259 = vld [vmem:[#allocation8 + $0x1c] sm:$0xf]
    %v260 = vld [vmem:[#allocation8 + $0x20] sm:$0xf]
    %v261 = vld [vmem:[#allocation8 + $0x24] sm:$0xf]
    %v262 = vld [vmem:[#allocation8 + $0x28] sm:$0xf]
    %v263 = vld [vmem:[#allocation8 + $0x2c] sm:$0xf]
    %v264 = vld [vmem:[#allocation8 + $0x30] sm:$0xf]
    %v265 = vld [vmem:[#allocation8 + $0x34] sm:$0xf]
    %v266 = vld [vmem:[#allocation8 + $0x38] sm:$0xf]
    %v267 = vld [vmem:[#allocation8 + $0x3c] sm:$0xf]
    %v268 = vld [vmem:[#allocation8 + $0x40] sm:$0xf]
    %v269 = vld [vmem:[#allocation8 + $0x44] sm:$0xf]
    %v270 = vld [vmem:[#allocation8 + $0x48] sm:$0xf]
    %v271 = vld [vmem:[#allocation8 + $0x4c] sm:$0xf]
    %v272 = vld [vmem:[#allocation8 + $0x50] sm:$0xf]
    %v273 = vld [vmem:[#allocation8 + $0x54] sm:$0xf]
    %v274 = vld [vmem:[#allocation8 + $0x58] sm:$0xf]
    %v275 = vld [vmem:[#allocation8 + $0x5c] sm:$0xf]
    %v276 = vld [vmem:[#allocation8 + $0x60] sm:$0xf]
    %v277 = vld [vmem:[#allocation8 + $0x64] sm:$0xf]
    %v278 = vld [vmem:[#allocation8 + $0x68] sm:$0xf]
    %v279 = vld [vmem:[#allocation8 + $0x6c] sm:$0xf]
    %v280 = vld [vmem:[#allocation8 + $0x70] sm:$0xf]
    %v281 = vld [vmem:[#allocation8 + $0x74] sm:$0xf]
    %v282 = vld [vmem:[#allocation8 + $0x78] sm:$0xf]
    %v283 = vld [vmem:[#allocation8 + $0x7c] sm:$0xf]
    %v316 = vunpack.c.l.b16 %v252
    %v317 = vunpack.c.l.b16 %v253
    %v318 = vunpack.c.l.b16 %v254
    %v319 = vunpack.c.l.b16 %v255
    %v320 = vunpack.c.l.b16 %v256
    %v321 = vunpack.c.l.b16 %v257
    %v322 = vunpack.c.l.b16 %v258
    %v323 = vunpack.c.l.b16 %v259
    %v324 = vunpack.c.l.b16 %v260
    %v325 = vunpack.c.l.b16 %v261
    %v326 = vunpack.c.l.b16 %v262
    %v327 = vunpack.c.l.b16 %v263
    %v328 = vunpack.c.l.b16 %v264
    %v329 = vunpack.c.l.b16 %v265
    %v330 = vunpack.c.l.b16 %v266
    %v331 = vunpack.c.l.b16 %v267
    %v332 = vunpack.c.l.b16 %v268
    %v333 = vunpack.c.l.b16 %v269
    %v334 = vunpack.c.l.b16 %v270
    %v335 = vunpack.c.l.b16 %v271
    %v336 = vunpack.c.l.b16 %v272
    %v337 = vunpack.c.l.b16 %v273
    %v338 = vunpack.c.l.b16 %v274
    %v339 = vunpack.c.l.b16 %v275
    %v340 = vunpack.c.l.b16 %v276
    %v341 = vunpack.c.l.b16 %v277
    %v342 = vunpack.c.l.b16 %v278
    %v343 = vunpack.c.l.b16 %v279
    %v344 = vunpack.c.l.b16 %v280
    %v345 = vunpack.c.l.b16 %v281
    %v346 = vunpack.c.l.b16 %v282
    %v347 = vunpack.c.l.b16 %v283
    %v348 = vpack.c.b16 %v317, %v316
    %v349 = vpack.c.b16 %v319, %v318
    %v350 = vpack.c.b16 %v321, %v320
    %v351 = vpack.c.b16 %v323, %v322
    %v352 = vpack.c.b16 %v325, %v324
    %v353 = vpack.c.b16 %v327, %v326
    %v354 = vpack.c.b16 %v329, %v328
    %v355 = vpack.c.b16 %v331, %v330
    %v356 = vpack.c.b16 %v333, %v332
    %v357 = vpack.c.b16 %v335, %v334
    %v358 = vpack.c.b16 %v337, %v336
    %v359 = vpack.c.b16 %v339, %v338
    %v360 = vpack.c.b16 %v341, %v340
    %v361 = vpack.c.b16 %v343, %v342
    %v362 = vpack.c.b16 %v345, %v344
    %v363 = vpack.c.b16 %v347, %v346
    %380 = vmatprep.subr.bf16.mxu0 0
    %381 = vmatpush1.bf16.msra.mxu0 %v348
    %382 = vmatprep.subr.bf16.mxu0 0
    %383 = vmatpush1.bf16.msra.mxu0 %v349
    %384 = vmatprep.subr.bf16.mxu0 0
    %385 = vmatpush1.bf16.msra.mxu0 %v350
    %386 = vmatprep.subr.bf16.mxu0 0
    %387 = vmatpush1.bf16.msra.mxu0 %v351
    %388 = vmatprep.subr.bf16.mxu0 0
    %389 = vmatpush1.bf16.msra.mxu0 %v352
    %390 = vmatprep.subr.bf16.mxu0 0
    %391 = vmatpush1.bf16.msra.mxu0 %v353
    %392 = vmatprep.subr.bf16.mxu0 0
    %393 = vmatpush1.bf16.msra.mxu0 %v354
    %394 = vmatprep.subr.bf16.mxu0 0
    %395 = vmatpush1.bf16.msra.mxu0 %v355
    %396 = vmatprep.subr.bf16.mxu0 0
    %397 = vmatpush1.bf16.msra.mxu0 %v356
    %398 = vmatprep.subr.bf16.mxu0 0
    %399 = vmatpush1.bf16.msra.mxu0 %v357
    %400 = vmatprep.subr.bf16.mxu0 0
    %401 = vmatpush1.bf16.msra.mxu0 %v358
    %402 = vmatprep.subr.bf16.mxu0 0
    %403 = vmatpush1.bf16.msra.mxu0 %v359
    %404 = vmatprep.subr.bf16.mxu0 0
    %405 = vmatpush1.bf16.msra.mxu0 %v360
    %406 = vmatprep.subr.bf16.mxu0 0
    %407 = vmatpush1.bf16.msra.mxu0 %v361
    %408 = vmatprep.subr.bf16.mxu0 0
    %409 = vmatpush1.bf16.msra.mxu0 %v362
    %410 = vmatprep.subr.bf16.mxu0 0
    %411 = vmatpush1.bf16.msra.mxu0 %v363
    %412 = vmatprep.mubr.bf16.mxu0 %v251
    %413 = vmatmul.mubr.bf16.gmra.mrb[0].mxu0 %v250
    %v414 = vpop.f32.mrb[0].mxu0
    %v415 = vadd.f32 0.0, %v414
    %v416 = vpop.f32.mrb[0].mxu0
    %v417 = vpop.f32.mrb[0].mxu0
    %v418 = vadd.f32 0.0, %v417
    %v419 = vpop.f32.mrb[0].mxu0
    %420 = vdwg.mxu0
    %v421 = vadd.f32 %v248, %v415
    %v422 = vadd.f32 %v249, %v418
    %423 = vst [vmem:[#allocation2] sm:$0xff] %v421
    %424 = vst [vmem:[#allocation2 + $0x8] sm:$0xff] %v422
    // Predicated region
    $region38: #{tpu_custom_call.1} parent=1 // pred_check
      %p425 = pneg %p63
    $region39: #{tpu_custom_call.1} parent=1 // pred_check_branch
      %427 = sbr.rel (%p425) target = $region41
    $region40: #{tpu_custom_call.1} parent=1 // pred_region
      %v428 = vld [vmem:[#allocation2] sm:$0xff]
      %v429 = vld [vmem:[#allocation2 + $0x8] sm:$0xff]
      %v430 = vld [vmem:[%s4] sm:$0x1]
      %v432 = vlaneseq
      %v433 = vshrl.u32 %v432, 7
      %v434 = vsub.s32 0, %v433
      %v435 = vrot.slane %v430, %v434
      %v437 = vadd.f32 %v428, %v435
      %v438 = vadd.f32 %v429, %v435
      %439 = vst [vmem:[#allocation9] sm:$0xff] %v437
      %440 = vst [vmem:[#allocation9 + $0x8] sm:$0xff] %v438
    $region41: #{tpu_custom_call.1} parent=1 // pred_fallthru
      _
    // Predicated region
    $region42: #{tpu_custom_call.1} parent=1 // pred_check
      _
    $region43: #{tpu_custom_call.1} parent=1 // pred_check_branch
      %442 = sbr.rel (0) target = $region45
    $region44: #{tpu_custom_call.1} parent=1 // pred_region
      %s444 = ssub.s32 256, 256
      %445 = vsyncadd [#allocation5], %s444
      %s446 = sshll.u32 [#allocation9], 4
      %s447 = int_to_ptr.vmem [resolvable:$true] %s446
      %452 = dma.vmem_to_hbm [thread:$0]  %s447, 256, %s5, [#allocation5], 128, 128, 8
    $region45: #{tpu_custom_call.1} parent=1 // pred_fallthru
      _
    // Predicated region
    $region46: #{tpu_custom_call.1} parent=1 // pred_check
      _
    $region47: #{tpu_custom_call.1} parent=1 // pred_check_branch
      %454 = sbr.rel (0) target = $region49
    $region48: #{tpu_custom_call.1} parent=1 // pred_region
      %455 = dma.done [#allocation5], 256
    $region49: #{tpu_custom_call.1} parent=1 // pred_fallthru
      _
    %456 = vsyncpa [#allocation4], 1
    %457 = vsyncpa [#allocation7], 1
    %458 = vsyncpa [#allocation5], 1

</llo_original>
